<compile_context>
chip_gen: v7x
topology: tpu7x:2x2x1
jax: 0.10.0
libtpu: 0.0.40
codegen_flags: <defaults>
</compile_context>

<pallas_src>
import functools

import jax
import jax.numpy as jnp
from jax.experimental import pallas as pl
from jax.experimental.pallas import tpu as pltpu


def _round_up(n, m):
    return ((n + m - 1) // m) * m


def _cdiv(a, b):
    return (a + b - 1) // b


def gating_kernel(x_ref, w_ref, b_ref, sparse_ref, idx_ref, logits_ref, acc_ref, *, topk):
    # x_ref: (TN, HC) tokens x hidden-chunk, w_ref: (E, HC), b_ref: (E, 1) f32
    # acc_ref: (E, TN) f32 scratch accumulator (persists across the H-chunk axis).
    k = pl.program_id(1)
    last_k = pl.num_programs(1) - 1

    @pl.when(k == 0)
    def _():
        acc_ref[...] = jnp.zeros_like(acc_ref)

    # Partial transposed contraction: acc += W_chunk(E, HC) @ x_chunk(TN, HC)^T -> (E, TN).
    # Same contraction pattern as q @ k^T; Mosaic lowers it as a transposed-RHS MXU
    # matmul (no XLU transpose of the (TN, HC) activation block).
    acc_ref[...] += jax.lax.dot_general(
        w_ref[...], x_ref[...],
        dimension_numbers=(((1,), (1,)), ((), ())),
        preferred_element_type=jnp.float32,
    )

    @pl.when(k == last_k)
    def _():
        logits = acc_ref[...] + b_ref[...]                 # (E, TN) f32
        logits_ref[...] = logits.astype(logits_ref.dtype)

        num_experts, tn = logits.shape
        ids = jax.lax.broadcasted_iota(jnp.int32, (num_experts, tn), 0)
        neg_inf = jnp.float32(-jnp.inf)

        # Iterative top-k via repeated argmax over the (small) expert/sublane axis.
        # `sparse` is built incrementally (no separate `selected` temporary).
        cur = logits
        sparse = jnp.full((num_experts, tn), neg_inf, dtype=jnp.float32)
        for t in range(topk):
            m = jnp.max(cur, axis=0, keepdims=True)                        # (1, TN)
            is_max = cur == m
            # tie-break: smallest expert index among maxima
            idx = jnp.min(jnp.where(is_max, ids, num_experts), axis=0, keepdims=True)
            pick = ids == idx
            sparse = jnp.where(pick, logits, sparse)
            cur = jnp.where(pick, neg_inf, cur)
            idx_ref[pl.ds(t, 1), :] = idx.astype(idx_ref.dtype)            # lane-dense row store

        # Softmax over the expert (sublane) axis; exact reciprocal on the (1, TN) denom
        # (cost negligible; keeps router probabilities exact for aux losses).
        mmax = jnp.max(sparse, axis=0, keepdims=True)
        p = jnp.exp(sparse - mmax)                         # exp(-inf) -> 0 for non-topk
        denom = jnp.sum(p, axis=0, keepdims=True)          # (1, TN)
        inv = jnp.float32(1.0) / denom
        sparse_ref[...] = (p * inv).astype(sparse_ref.dtype)


def gating_forward(x, weight, bias, topk, *,
                   max_token_tile=1024,
                   expert_major_outputs=False):
    """x: (B, S, H) (f32 or bf16). weight: (E, H) (torch Linear layout). bias: (E,)."""
    B, S, H = x.shape
    E, H2 = weight.shape
    assert H2 == H
    N = B * S

    x_2d = x.reshape(N, H)                       # no dtype cast -> no extra HBM pass over x
    in_dtype = x_2d.dtype
    out_dtype = in_dtype
    w = weight.astype(in_dtype)                  # tiny; MXU runs at the activation dtype
    b_col = bias.reshape(E, 1).astype(jnp.float32)

    dsize = jnp.dtype(in_dtype).itemsize
    osize = jnp.dtype(out_dtype).itemsize

    # --- generation-aware VMEM budget (v7x: 64 MiB/TC, v5e/v6e: 128 MiB) --------------
    try:
        vmem_cap = int(pltpu.get_tpu_info().vmem_capacity_bytes)
    except Exception:
        vmem_cap = 0
    if not vmem_cap:
        vmem_cap = 64 << 20                      # conservative fallback (v7x per-TC)
    budget = int(vmem_cap * 0.6)

    e_pad = _round_up(E, 8)
    k_pad = _round_up(topk, 8)

    def vmem_bytes(t, hc, w_bufs):
        hc_pad = _round_up(hc, 128)              # lane padding of the hidden axis
        x_b = 2 * t * hc_pad * dsize             # double-buffered activation tile
        w_b = w_bufs * e_pad * hc_pad * dsize    # gate-weight chunk
        b_b = 2 * e_pad * 128 * 4                # bias column (lane-padded, pessimistic)
        out_b = 2 * (2 * e_pad * t * osize + k_pad * t * 4)   # sparse + logits + indices
        acc_b = e_pad * t * 4                    # accumulator scratch
        tmp_b = 6 * e_pad * t * 4                # logits/ids/cur/sparse/p temporaries
        return x_b + w_b + b_b + out_b + acc_b + tmp_b

    # Prefer chunking H (keeps the token tile large and outputs lane-dense) over
    # shrinking the token tile.  Chunks must be 128-multiples that divide H exactly.
    hc_candidates = [H] + [c for c in (2048, 1024, 512, 256, 128) if c < H and H % c == 0]

    tile = max(128, min(_round_up(max_token_tile, 128), _round_up(N, 128)))
    sel = None
    t = tile
    while t >= 128 and sel is None:
        for hc in hc_candidates:
            wb = 1 if hc == H else 2             # resident weight when H is not chunked
            if vmem_bytes(t, hc, wb) <= budget:
                sel = (t, hc)
                break
        if sel is None:
            t -= 128
    if sel is None:
        sel = (128, hc_candidates[-1])           # TODO(synk): mask/chunk for huge non-128-multiple H
    tile, h_chunk = sel

    # v7x megacore: give the parallel (token-tile) axis at least 2 steps when possible.
    if _cdiv(N, tile) < 2 and N > 128:
        tile = _round_up(_cdiv(N, 2), 128)
    if N < 128:
        tile = N                                 # exact single block at tiny sizes (no OOB lanes)

    num_token_tiles = _cdiv(N, tile)
    num_h_chunks = H // h_chunk

    est = vmem_bytes(tile, h_chunk, 1 if num_h_chunks == 1 else 2)
    vmem_limit = int(min(int(vmem_cap * 0.8), max(est + (16 << 20), 32 << 20)))

    kernel = functools.partial(gating_kernel, topk=topk)
    grid = (num_token_tiles, num_h_chunks)

    cost = pl.CostEstimate(
        flops=2 * N * H * E,
        transcendentals=N * E,
        bytes_accessed=N * H * dsize + E * H * dsize + 2 * N * E * osize + N * topk * 4,
    )

    def build(single_buffer_resident):
        w_kwargs, b_kwargs = {}, {}
        if single_buffer_resident:
            b_kwargs = dict(pipeline_mode=pl.Buffered(1))        # constant index map
            if num_h_chunks == 1:
                w_kwargs = dict(pipeline_mode=pl.Buffered(1))    # resident weight block
        w_index = (lambda i, k: (0, k)) if num_h_chunks > 1 else (lambda i, k: (0, 0))
        return pl.pallas_call(
            kernel,
            out_shape=(
                jax.ShapeDtypeStruct((E, N), out_dtype),         # sparse_logits^T
                jax.ShapeDtypeStruct((topk, N), jnp.int32),      # indices^T
                jax.ShapeDtypeStruct((E, N), out_dtype),         # gate_logit^T
            ),
            grid_spec=pltpu.PrefetchScalarGridSpec(
                num_scalar_prefetch=0,
                grid=grid,
                in_specs=[
                    pl.BlockSpec((tile, h_chunk), lambda i, k: (i, k)),    # activations
                    pl.BlockSpec((E, h_chunk), w_index, **w_kwargs),       # gate weight
                    pl.BlockSpec((E, 1), lambda i, k: (0, 0), **b_kwargs),  # bias column
                ],
                out_specs=[
                    pl.BlockSpec((E, tile), lambda i, k: (0, i)),
                    pl.BlockSpec((topk, tile), lambda i, k: (0, i)),
                    pl.BlockSpec((E, tile), lambda i, k: (0, i)),
                ],
                scratch_shapes=[pltpu.VMEM((E, tile), jnp.float32)],
            ),
            compiler_params=pltpu.CompilerParams(
                dimension_semantics=("parallel", "arbitrary"),
                vmem_limit_bytes=vmem_limit,
            ),
            cost_estimate=cost,
        )

    single_buf = hasattr(pl, "Buffered")
    try:
        sparse_t, idx_t, logits_t = build(single_buf)(x_2d, w, b_col)
    except Exception:
        if not single_buf:
            raise
        # Fall back to default double-buffered resident blocks if Buffered(1) is rejected.
        sparse_t, idx_t, logits_t = build(False)(x_2d, w, b_col)

    if expert_major_outputs:
        # Expert-major layout, usable directly by expert-parallel dispatch (no transpose pass).
        return sparse_t, idx_t, logits_t

    # Torch conventions: sparse (B,S,E), indices (B,S,topk) [int32], gate_logit (B*S, E).
    sparse = sparse_t.T.reshape(B, S, E)
    indices = idx_t.T.reshape(B, S, topk)
    gate_logit = logits_t.T
    return sparse, indices, gate_logit


def gating_ref(x, weight, bias, topk):
    """Pure-JAX reference matching the PyTorch module."""
    logits = jnp.einsum("bsh,eh->bse", x, weight) + bias
    _, idx = jax.lax.top_k(logits, topk)
    onehot = jax.nn.one_hot(idx, logits.shape[-1], dtype=bool).any(axis=-2)
    sparse = jnp.where(onehot, logits, -jnp.inf)
    sparse = jax.nn.softmax(sparse, axis=-1)
    return sparse, idx, logits.reshape(-1, logits.shape[-1])


if __name__ == "__main__":
    # config: hidden_size=32, expert_num=8, topk=2; input (batch=2, seq=8, hidden=32)
    B, S, H, E, TOPK = 2, 8, 32, 8, 2

    key = jax.random.PRNGKey(0)
    kx, kw, kb = jax.random.split(key, 3)
    x = jax.random.normal(kx, (B, S, H), dtype=jnp.float32)
    weight = jax.random.normal(kw, (E, H), dtype=jnp.float32) * 0.05  # nn.Linear weight (E,H)
    bias = jax.random.normal(kb, (E,), dtype=jnp.float32) * 0.05

    sparse_logits, indices, gate_logit = gating_forward(x, weight, bias, TOPK)
    jax.block_until_ready((sparse_logits, indices, gate_logit))

    # correctness check against pure-JAX reference (exact softmax denom -> tight tolerances)
    ref_sparse, ref_idx, ref_gate = gating_ref(x, weight, bias, TOPK)
    assert jnp.allclose(gate_logit, ref_gate, atol=1e-4, rtol=1e-4)
    assert jnp.allclose(sparse_logits, ref_sparse, atol=1e-5, rtol=1e-4)
    # compare index sets (order-insensitive in case of value ties)
    assert jnp.array_equal(jnp.sort(indices, axis=-1), jnp.sort(ref_idx, axis=-1))

    # bf16 activation path smoke test: kernel streams bf16, accumulates in f32 on the MXU.
    xb = x.astype(jnp.bfloat16)
    sb, ib, gb = gating_forward(xb, weight, bias, TOPK)
    jax.block_until_ready((sb, ib, gb))
    assert sb.shape == (B, S, E) and ib.shape == (B, S, TOPK) and gb.shape == (B * S, E)
    assert jnp.allclose(jnp.sum(sb.astype(jnp.float32), axis=-1), 1.0, atol=1e-2)

    print("KERNEL_OK")
</pallas_src>

<mosaic_0001>
module attributes {stable_mosaic.version = 11 : i64} {
  func.func @gating_kernel(%arg0: i32, %arg1: i32, %arg2: memref<16x32xf32, #tpu.memory_space<vmem>>, %arg3: memref<8x32xf32, #tpu.memory_space<vmem>>, %arg4: memref<8x1xf32, #tpu.memory_space<vmem>>, %arg5: memref<8x16xf32, #tpu.memory_space<vmem>>, %arg6: memref<2x16xi32, #tpu.memory_space<vmem>>, %arg7: memref<8x16xf32, #tpu.memory_space<vmem>>, %arg8: memref<8x16xf32, #tpu.memory_space<vmem>>) attributes {dimension_semantics = [#tpu.dimension_semantics<parallel>, #tpu.dimension_semantics<arbitrary>], iteration_bounds = array<i64: 1, 1>, scalar_prefetch = 0 : i64, scratch_operands = 1 : i64, tpu.core_type = #tpu.core_type<tc>, window_params = [{transform_indices = @transform_0, window_bounds = array<i64: 16, 32>}, {pipeline_mode = #tpu.pipeline_mode<synchronous>, transform_indices = @transform_1, window_bounds = array<i64: 8, 32>}, {pipeline_mode = #tpu.pipeline_mode<synchronous>, transform_indices = @transform_2, window_bounds = array<i64: 8, 1>}, {transform_indices = @transform_3, window_bounds = array<i64: 8, 16>}, {transform_indices = @transform_4, window_bounds = array<i64: 2, 16>}, {transform_indices = @transform_5, window_bounds = array<i64: 8, 16>}]} {
    %c0_i32 = arith.constant 0 : i32
    %0 = arith.cmpi eq, %arg1, %c0_i32 : i32
    %1 = arith.extui %0 : i1 to i32
    %c0_i32_0 = arith.constant 0 : i32
    %2 = arith.cmpi ne, %1, %c0_i32_0 : i32
    scf.if %2 {
      %cst_10 = arith.constant 0.000000e+00 : f32
      %12 = vector.broadcast %cst_10 : f32 to vector<8x16xf32>
      %c0_11 = arith.constant 0 : index
      %c0_12 = arith.constant 0 : index
      %13 = vector.load %arg8[%c0_11, %c0_12] : memref<8x16xf32, #tpu.memory_space<vmem>>, vector<8x16xf32>
      tpu.vector_store %arg8[%c0_11, %c0_12], %12 {strides = array<i32>} : memref<8x16xf32, #tpu.memory_space<vmem>>, vector<8x16xf32>,
    } else {
    }
    %c0 = arith.constant 0 : index
    %c0_1 = arith.constant 0 : index
    %3 = vector.load %arg8[%c0, %c0_1] : memref<8x16xf32, #tpu.memory_space<vmem>>, vector<8x16xf32>
    %c0_2 = arith.constant 0 : index
    %c0_3 = arith.constant 0 : index
    %4 = vector.load %arg3[%c0_2, %c0_3] : memref<8x32xf32, #tpu.memory_space<vmem>>, vector<8x32xf32>
    %c0_4 = arith.constant 0 : index
    %c0_5 = arith.constant 0 : index
    %5 = vector.load %arg2[%c0_4, %c0_5] : memref<16x32xf32, #tpu.memory_space<vmem>>, vector<16x32xf32>
    %cst = arith.constant dense<0.000000e+00> : vector<8x16xf32>
    %6 = tpu.matmul %4, %5, %cst {dimension_numbers = #tpu.dot_dimension_numbers<[1], [1], [0], [0], [0, 0, 1, 0], [], []>} : vector<8x32xf32>, vector<16x32xf32>, vector<8x16xf32> -> vector<8x16xf32>
    %7 = arith.addf %3, %6 : vector<8x16xf32>
    %c0_6 = arith.constant 0 : index
    %c0_7 = arith.constant 0 : index
    %8 = vector.load %arg8[%c0_6, %c0_7] : memref<8x16xf32, #tpu.memory_space<vmem>>, vector<8x16xf32>
    tpu.vector_store %arg8[%c0_6, %c0_7], %7 {strides = array<i32>} : memref<8x16xf32, #tpu.memory_space<vmem>>, vector<8x16xf32>,
    %c0_i32_8 = arith.constant 0 : i32
    %9 = arith.cmpi eq, %arg1, %c0_i32_8 : i32
    %10 = arith.extui %9 : i1 to i32
    %c0_i32_9 = arith.constant 0 : i32
    %11 = arith.cmpi ne, %10, %c0_i32_9 : i32
    scf.if %11 {
      %c0_10 = arith.constant 0 : index
      %c0_11 = arith.constant 0 : index
      %12 = vector.load %arg8[%c0_10, %c0_11] : memref<8x16xf32, #tpu.memory_space<vmem>>, vector<8x16xf32>
      %c0_12 = arith.constant 0 : index
      %c0_13 = arith.constant 0 : index
      %13 = vector.load %arg4[%c0_12, %c0_13] : memref<8x1xf32, #tpu.memory_space<vmem>>, vector<8x1xf32>
      %14 = vector.broadcast %13 : vector<8x1xf32> to vector<8x16xf32>
      %15 = arith.addf %12, %14 : vector<8x16xf32>
      %c0_14 = arith.constant 0 : index
      %c0_15 = arith.constant 0 : index
      %16 = vector.load %arg7[%c0_14, %c0_15] : memref<8x16xf32, #tpu.memory_space<vmem>>, vector<8x16xf32>
      tpu.vector_store %arg7[%c0_14, %c0_15], %15 {strides = array<i32>} : memref<8x16xf32, #tpu.memory_space<vmem>>, vector<8x16xf32>,
      %17 = tpu.iota {dimensions = array<i32: 0>} : vector<8x16xi32>
      %cst_16 = arith.constant 0xFF800000 : f32
      %18 = vector.broadcast %cst_16 : f32 to vector<8x16xf32>
      %cst_17 = arith.constant dense<0xFF800000> : vector<16xf32>
      %19 = vector.multi_reduction <maximumf>, %15, %cst_17 [0] : vector<8x16xf32> to vector<16xf32>
      %20 = vector.shape_cast %19 : vector<16xf32> to vector<1x16xf32>
      %21 = vector.broadcast %20 : vector<1x16xf32> to vector<8x16xf32>
      %22 = arith.cmpf oeq, %15, %21 : vector<8x16xf32>
      %c8_i32 = arith.constant 8 : i32
      %23 = vector.broadcast %c8_i32 : i32 to vector<8x16xi32>
      %24 = arith.select %22, %17, %23 : vector<8x16xi1>, vector<8x16xi32>
      %cst_18 = arith.constant dense<2147483647> : vector<16xi32>
      %25 = vector.multi_reduction <minsi>, %24, %cst_18 [0] : vector<8x16xi32> to vector<16xi32>
      %26 = vector.shape_cast %25 : vector<16xi32> to vector<1x16xi32>
      %27 = vector.broadcast %26 : vector<1x16xi32> to vector<8x16xi32>
      %28 = arith.cmpi eq, %17, %27 : vector<8x16xi32>
      %29 = arith.select %28, %15, %18 : vector<8x16xi1>, vector<8x16xf32>
      %cst_19 = arith.constant 0xFF800000 : f32
      %30 = vector.broadcast %cst_19 : f32 to vector<8x16xf32>
      %31 = arith.select %28, %30, %15 : vector<8x16xi1>, vector<8x16xf32>
      %c0_20 = arith.constant 0 : index
      %c0_21 = arith.constant 0 : index
      %32 = vector.load %arg6[%c0_20, %c0_21] : memref<2x16xi32, #tpu.memory_space<vmem>>, vector<1x16xi32>
      tpu.vector_store %arg6[%c0_20, %c0_21], %26 {strides = array<i32>} : memref<2x16xi32, #tpu.memory_space<vmem>>, vector<1x16xi32>,
      %cst_22 = arith.constant dense<0xFF800000> : vector<16xf32>
      %33 = vector.multi_reduction <maximumf>, %31, %cst_22 [0] : vector<8x16xf32> to vector<16xf32>
      %34 = vector.shape_cast %33 : vector<16xf32> to vector<1x16xf32>
      %35 = vector.broadcast %34 : vector<1x16xf32> to vector<8x16xf32>
      %36 = arith.cmpf oeq, %31, %35 : vector<8x16xf32>
      %c8_i32_23 = arith.constant 8 : i32
      %37 = vector.broadcast %c8_i32_23 : i32 to vector<8x16xi32>
      %38 = arith.select %36, %17, %37 : vector<8x16xi1>, vector<8x16xi32>
      %cst_24 = arith.constant dense<2147483647> : vector<16xi32>
      %39 = vector.multi_reduction <minsi>, %38, %cst_24 [0] : vector<8x16xi32> to vector<16xi32>
      %40 = vector.shape_cast %39 : vector<16xi32> to vector<1x16xi32>
      %41 = vector.broadcast %40 : vector<1x16xi32> to vector<8x16xi32>
      %42 = arith.cmpi eq, %17, %41 : vector<8x16xi32>
      %43 = arith.select %42, %15, %29 : vector<8x16xi1>, vector<8x16xf32>
      %c1 = arith.constant 1 : index
      %c0_25 = arith.constant 0 : index
      %44 = vector.load %arg6[%c1, %c0_25] : memref<2x16xi32, #tpu.memory_space<vmem>>, vector<1x16xi32>
      tpu.vector_store %arg6[%c1, %c0_25], %40 {strides = array<i32>} : memref<2x16xi32, #tpu.memory_space<vmem>>, vector<1x16xi32>,
      %cst_26 = arith.constant dense<0xFF800000> : vector<16xf32>
      %45 = vector.multi_reduction <maximumf>, %43, %cst_26 [0] : vector<8x16xf32> to vector<16xf32>
      %46 = vector.shape_cast %45 : vector<16xf32> to vector<1x16xf32>
      %47 = vector.broadcast %46 : vector<1x16xf32> to vector<8x16xf32>
      %48 = arith.subf %43, %47 : vector<8x16xf32>
      %49 = math.exp %48 : vector<8x16xf32>
      %cst_27 = arith.constant dense<0.000000e+00> : vector<16xf32>
      %50 = vector.multi_reduction <add>, %49, %cst_27 [0] : vector<8x16xf32> to vector<16xf32>
      %51 = vector.shape_cast %50 : vector<16xf32> to vector<1x16xf32>
      %cst_28 = arith.constant 1.000000e+00 : f32
      %52 = vector.broadcast %cst_28 : f32 to vector<1x16xf32>
      %53 = arith.divf %52, %51 : vector<1x16xf32>
      %54 = vector.broadcast %53 : vector<1x16xf32> to vector<8x16xf32>
      %55 = arith.mulf %49, %54 : vector<8x16xf32>
      %c0_29 = arith.constant 0 : index
      %c0_30 = arith.constant 0 : index
      %56 = vector.load %arg5[%c0_29, %c0_30] : memref<8x16xf32, #tpu.memory_space<vmem>>, vector<8x16xf32>
      tpu.vector_store %arg5[%c0_29, %c0_30], %55 {strides = array<i32>} : memref<8x16xf32, #tpu.memory_space<vmem>>, vector<8x16xf32>,
    } else {
    }
    return
  }
  func.func @transform_0(%arg0: i32, %arg1: i32) -> (i32, i32) {
    %c0_i32 = arith.constant 0 : i32
    return %arg0, %arg1 : i32, i32
  }
  func.func @transform_1(%arg0: i32, %arg1: i32) -> (i32, i32) {
    %c0_i32 = arith.constant 0 : i32
    %c0_i32_0 = arith.constant 0 : i32
    %c0_i32_1 = arith.constant 0 : i32
    return %c0_i32, %c0_i32_0 : i32, i32
  }
  func.func @transform_2(%arg0: i32, %arg1: i32) -> (i32, i32) {
    %c0_i32 = arith.constant 0 : i32
    %c0_i32_0 = arith.constant 0 : i32
    %c0_i32_1 = arith.constant 0 : i32
    return %c0_i32, %c0_i32_0 : i32, i32
  }
  func.func @transform_3(%arg0: i32, %arg1: i32) -> (i32, i32) {
    %c0_i32 = arith.constant 0 : i32
    %c0_i32_0 = arith.constant 0 : i32
    return %c0_i32, %arg0 : i32, i32
  }
  func.func @transform_4(%arg0: i32, %arg1: i32) -> (i32, i32) {
    %c0_i32 = arith.constant 0 : i32
    %c0_i32_0 = arith.constant 0 : i32
    return %c0_i32, %arg0 : i32, i32
  }
  func.func @transform_5(%arg0: i32, %arg1: i32) -> (i32, i32) {
    %c0_i32 = arith.constant 0 : i32
    %c0_i32_0 = arith.constant 0 : i32
    return %c0_i32, %arg0 : i32, i32
  }
}

module attributes {stable_mosaic.version = 11 : i64} {
  func.func @gating_kernel(%arg0: i32, %arg1: i32, %arg2: memref<16x32xf32, #tpu.memory_space<vmem>>, %arg3: memref<8x32xf32, #tpu.memory_space<vmem>>, %arg4: memref<8x1xf32, #tpu.memory_space<vmem>>, %arg5: memref<8x16xf32, #tpu.memory_space<vmem>>, %arg6: memref<2x16xi32, #tpu.memory_space<vmem>>, %arg7: memref<8x16xf32, #tpu.memory_space<vmem>>, %arg8: memref<8x16xf32, #tpu.memory_space<vmem>>) attributes {dimension_semantics = [#tpu.dimension_semantics<parallel>, #tpu.dimension_semantics<arbitrary>], iteration_bounds = array<i64: 1, 1>, scalar_prefetch = 0 : i64, scratch_operands = 1 : i64, tpu.core_type = #tpu.core_type<tc>, window_params = [{transform_indices = @transform_0, window_bounds = array<i64: 16, 32>}, {pipeline_mode = #tpu.pipeline_mode<synchronous>, transform_indices = @transform_1, window_bounds = array<i64: 8, 32>}, {pipeline_mode = #tpu.pipeline_mode<synchronous>, transform_indices = @transform_2, window_bounds = array<i64: 8, 1>}, {transform_indices = @transform_3, window_bounds = array<i64: 8, 16>}, {transform_indices = @transform_4, window_bounds = array<i64: 2, 16>}, {transform_indices = @transform_5, window_bounds = array<i64: 8, 16>}]} {
    %c0_i32 = arith.constant 0 : i32
    %0 = arith.cmpi eq, %arg1, %c0_i32 : i32
    %1 = arith.extui %0 : i1 to i32
    %c0_i32_0 = arith.constant 0 : i32
    %2 = arith.cmpi ne, %1, %c0_i32_0 : i32
    scf.if %2 {
      %cst_10 = arith.constant 0.000000e+00 : f32
      %12 = vector.broadcast %cst_10 : f32 to vector<8x16xf32>
      %c0_11 = arith.constant 0 : index
      %c0_12 = arith.constant 0 : index
      %13 = vector.load %arg8[%c0_11, %c0_12] : memref<8x16xf32, #tpu.memory_space<vmem>>, vector<8x16xf32>
      tpu.vector_store %arg8[%c0_11, %c0_12], %12 {strides = array<i32>} : memref<8x16xf32, #tpu.memory_space<vmem>>, vector<8x16xf32>,
    } else {
    }
    %c0 = arith.constant 0 : index
    %c0_1 = arith.constant 0 : index
    %3 = vector.load %arg8[%c0, %c0_1] : memref<8x16xf32, #tpu.memory_space<vmem>>, vector<8x16xf32>
    %c0_2 = arith.constant 0 : index
    %c0_3 = arith.constant 0 : index
    %4 = vector.load %arg3[%c0_2, %c0_3] : memref<8x32xf32, #tpu.memory_space<vmem>>, vector<8x32xf32>
    %c0_4 = arith.constant 0 : index
    %c0_5 = arith.constant 0 : index
    %5 = vector.load %arg2[%c0_4, %c0_5] : memref<16x32xf32, #tpu.memory_space<vmem>>, vector<16x32xf32>
    %cst = arith.constant dense<0.000000e+00> : vector<8x16xf32>
    %6 = tpu.matmul %4, %5, %cst {dimension_numbers = #tpu.dot_dimension_numbers<[1], [1], [0], [0], [0, 0, 1, 0], [], []>} : vector<8x32xf32>, vector<16x32xf32>, vector<8x16xf32> -> vector<8x16xf32>
    %7 = arith.addf %3, %6 : vector<8x16xf32>
    %c0_6 = arith.constant 0 : index
    %c0_7 = arith.constant 0 : index
    %8 = vector.load %arg8[%c0_6, %c0_7] : memref<8x16xf32, #tpu.memory_space<vmem>>, vector<8x16xf32>
    tpu.vector_store %arg8[%c0_6, %c0_7], %7 {strides = array<i32>} : memref<8x16xf32, #tpu.memory_space<vmem>>, vector<8x16xf32>,
    %c0_i32_8 = arith.constant 0 : i32
    %9 = arith.cmpi eq, %arg1, %c0_i32_8 : i32
    %10 = arith.extui %9 : i1 to i32
    %c0_i32_9 = arith.constant 0 : i32
    %11 = arith.cmpi ne, %10, %c0_i32_9 : i32
    scf.if %11 {
      %c0_10 = arith.constant 0 : index
      %c0_11 = arith.constant 0 : index
      %12 = vector.load %arg8[%c0_10, %c0_11] : memref<8x16xf32, #tpu.memory_space<vmem>>, vector<8x16xf32>
      %c0_12 = arith.constant 0 : index
      %c0_13 = arith.constant 0 : index
      %13 = vector.load %arg4[%c0_12, %c0_13] : memref<8x1xf32, #tpu.memory_space<vmem>>, vector<8x1xf32>
      %14 = vector.broadcast %13 : vector<8x1xf32> to vector<8x16xf32>
      %15 = arith.addf %12, %14 : vector<8x16xf32>
      %c0_14 = arith.constant 0 : index
      %c0_15 = arith.constant 0 : index
      %16 = vector.load %arg7[%c0_14, %c0_15] : memref<8x16xf32, #tpu.memory_space<vmem>>, vector<8x16xf32>
      tpu.vector_store %arg7[%c0_14, %c0_15], %15 {strides = array<i32>} : memref<8x16xf32, #tpu.memory_space<vmem>>, vector<8x16xf32>,
      %17 = tpu.iota {dimensions = array<i32: 0>} : vector<8x16xi32>
      %cst_16 = arith.constant 0xFF800000 : f32
      %18 = vector.broadcast %cst_16 : f32 to vector<8x16xf32>
      %cst_17 = arith.constant dense<0xFF800000> : vector<16xf32>
      %19 = vector.multi_reduction <maximumf>, %15, %cst_17 [0] : vector<8x16xf32> to vector<16xf32>
      %20 = vector.shape_cast %19 : vector<16xf32> to vector<1x16xf32>
      %21 = vector.broadcast %20 : vector<1x16xf32> to vector<8x16xf32>
      %22 = arith.cmpf oeq, %15, %21 : vector<8x16xf32>
      %c8_i32 = arith.constant 8 : i32
      %23 = vector.broadcast %c8_i32 : i32 to vector<8x16xi32>
      %24 = arith.select %22, %17, %23 : vector<8x16xi1>, vector<8x16xi32>
      %cst_18 = arith.constant dense<2147483647> : vector<16xi32>
      %25 = vector.multi_reduction <minsi>, %24, %cst_18 [0] : vector<8x16xi32> to vector<16xi32>
      %26 = vector.shape_cast %25 : vector<16xi32> to vector<1x16xi32>
      %27 = vector.broadcast %26 : vector<1x16xi32> to vector<8x16xi32>
      %28 = arith.cmpi eq, %17, %27 : vector<8x16xi32>
      %29 = arith.select %28, %15, %18 : vector<8x16xi1>, vector<8x16xf32>
      %cst_19 = arith.constant 0xFF800000 : f32
      %30 = vector.broadcast %cst_19 : f32 to vector<8x16xf32>
      %31 = arith.select %28, %30, %15 : vector<8x16xi1>, vector<8x16xf32>
      %c0_20 = arith.constant 0 : index
      %c0_21 = arith.constant 0 : index
      %32 = vector.load %arg6[%c0_20, %c0_21] : memref<2x16xi32, #tpu.memory_space<vmem>>, vector<1x16xi32>
      tpu.vector_store %arg6[%c0_20, %c0_21], %26 {strides = array<i32>} : memref<2x16xi32, #tpu.memory_space<vmem>>, vector<1x16xi32>,
      %cst_22 = arith.constant dense<0xFF800000> : vector<16xf32>
      %33 = vector.multi_reduction <maximumf>, %31, %cst_22 [0] : vector<8x16xf32> to vector<16xf32>
      %34 = vector.shape_cast %33 : vector<16xf32> to vector<1x16xf32>
      %35 = vector.broadcast %34 : vector<1x16xf32> to vector<8x16xf32>
      %36 = arith.cmpf oeq, %31, %35 : vector<8x16xf32>
      %c8_i32_23 = arith.constant 8 : i32
      %37 = vector.broadcast %c8_i32_23 : i32 to vector<8x16xi32>
      %38 = arith.select %36, %17, %37 : vector<8x16xi1>, vector<8x16xi32>
      %cst_24 = arith.constant dense<2147483647> : vector<16xi32>
      %39 = vector.multi_reduction <minsi>, %38, %cst_24 [0] : vector<8x16xi32> to vector<16xi32>
      %40 = vector.shape_cast %39 : vector<16xi32> to vector<1x16xi32>
      %41 = vector.broadcast %40 : vector<1x16xi32> to vector<8x16xi32>
      %42 = arith.cmpi eq, %17, %41 : vector<8x16xi32>
      %43 = arith.select %42, %15, %29 : vector<8x16xi1>, vector<8x16xf32>
      %c1 = arith.constant 1 : index
      %c0_25 = arith.constant 0 : index
      %44 = vector.load %arg6[%c1, %c0_25] : memref<2x16xi32, #tpu.memory_space<vmem>>, vector<1x16xi32>
      tpu.vector_store %arg6[%c1, %c0_25], %40 {strides = array<i32>} : memref<2x16xi32, #tpu.memory_space<vmem>>, vector<1x16xi32>,
      %cst_26 = arith.constant dense<0xFF800000> : vector<16xf32>
      %45 = vector.multi_reduction <maximumf>, %43, %cst_26 [0] : vector<8x16xf32> to vector<16xf32>
      %46 = vector.shape_cast %45 : vector<16xf32> to vector<1x16xf32>
      %47 = vector.broadcast %46 : vector<1x16xf32> to vector<8x16xf32>
      %48 = arith.subf %43, %47 : vector<8x16xf32>
      %49 = math.exp %48 : vector<8x16xf32>
      %cst_27 = arith.constant dense<0.000000e+00> : vector<16xf32>
      %50 = vector.multi_reduction <add>, %49, %cst_27 [0] : vector<8x16xf32> to vector<16xf32>
      %51 = vector.shape_cast %50 : vector<16xf32> to vector<1x16xf32>
      %cst_28 = arith.constant 1.000000e+00 : f32
      %52 = vector.broadcast %cst_28 : f32 to vector<1x16xf32>
      %53 = arith.divf %52, %51 : vector<1x16xf32>
      %54 = vector.broadcast %53 : vector<1x16xf32> to vector<8x16xf32>
      %55 = arith.mulf %49, %54 : vector<8x16xf32>
      %c0_29 = arith.constant 0 : index
      %c0_30 = arith.constant 0 : index
      %56 = vector.load %arg5[%c0_29, %c0_30] : memref<8x16xf32, #tpu.memory_space<vmem>>, vector<8x16xf32>
      tpu.vector_store %arg5[%c0_29, %c0_30], %55 {strides = array<i32>} : memref<8x16xf32, #tpu.memory_space<vmem>>, vector<8x16xf32>,
    } else {
    }
    return
  }
  func.func @transform_0(%arg0: i32, %arg1: i32) -> (i32, i32) {
    %c0_i32 = arith.constant 0 : i32
    return %arg0, %arg1 : i32, i32
  }
  func.func @transform_1(%arg0: i32, %arg1: i32) -> (i32, i32) {
    %c0_i32 = arith.constant 0 : i32
    %c0_i32_0 = arith.constant 0 : i32
    %c0_i32_1 = arith.constant 0 : i32
    return %c0_i32, %c0_i32_0 : i32, i32
  }
  func.func @transform_2(%arg0: i32, %arg1: i32) -> (i32, i32) {
    %c0_i32 = arith.constant 0 : i32
    %c0_i32_0 = arith.constant 0 : i32
    %c0_i32_1 = arith.constant 0 : i32
    return %c0_i32, %c0_i32_0 : i32, i32
  }
  func.func @transform_3(%arg0: i32, %arg1: i32) -> (i32, i32) {
    %c0_i32 = arith.constant 0 : i32
    %c0_i32_0 = arith.constant 0 : i32
    return %c0_i32, %arg0 : i32, i32
  }
  func.func @transform_4(%arg0: i32, %arg1: i32) -> (i32, i32) {
    %c0_i32 = arith.constant 0 : i32
    %c0_i32_0 = arith.constant 0 : i32
    return %c0_i32, %arg0 : i32, i32
  }
  func.func @transform_5(%arg0: i32, %arg1: i32) -> (i32, i32) {
    %c0_i32 = arith.constant 0 : i32
    %c0_i32_0 = arith.constant 0 : i32
    return %c0_i32, %arg0 : i32, i32
  }
}

</mosaic_0001>

<llo_original>
// kernel: tpu_custom_call.1
$region0: #{tpu_custom_call.1}
  #allocation0 [shape = 'u32[]', space=smem, size = 0x4, offset = 0x4, fixed_abs, tag = 'smem constant byte address 0x4 - core index']
  #allocation1 [shape = 'u32[144,128]{1,0:T(1,128)}', space=vmem, size = 0x12000, scoped, tag = 'internal scratch']
  #allocation2 [shape = 'f32[8,16]{1,0:T(8,128)}', space=vmem, size = 0x1000, scoped, tag = 'scratch operand']
  %s0 = inlined_call_operand.hbm [shape: f32[16,32], index: 0, kind: input, shape index: {}]
  %s1 = inlined_call_operand.vmem [shape: f32[8,32], index: 1, kind: input, shape index: {}]
  %s2 = inlined_call_operand.vmem [shape: f32[8,1], index: 2, kind: input, shape index: {}]
  %s3 = inlined_call_operand.hbm [shape: f32[8,16], index: 3, kind: output, shape index: {0}]
  %s4 = inlined_call_operand.hbm [shape: s32[2,16], index: 4, kind: output, shape index: {1}]
  %s5 = inlined_call_operand.hbm [shape: f32[8,16], index: 5, kind: output, shape index: {2}]
  %6 = xla_tuple %s3, %s4, %s5
  %s7 = sld [smem:[#allocation0]]
  $region50: #{tpu_custom_call.1} parent=0
    _
  %s9 = ssub.s32 1, %s7
  %s10 = scalar_select 0, %s9, %s7
  $region1: #{tpu_custom_call.1} parent=0
    #allocation3 [shape = 'u8[8192]{0}', space=vmem, size = 0x2000, scoped, tag = 'input window, operand 0, single buffered']
    #allocation4 [shape = 's32[1]{0}', space=sflag, size = 0x4, scoped, tag = 'scoped memory for tpu_custom_call.1']
    #allocation5 [shape = 's32[1]{0}', space=sflag, size = 0x4, scoped, tag = 'scoped memory for tpu_custom_call.1']
    #allocation6 [shape = 'u8[4096]{0}', space=vmem, size = 0x1000, scoped, tag = 'output window, operand 0, single buffered']
    #allocation7 [shape = 'u8[1024]{0}', space=vmem, size = 0x400, scoped, tag = 'output window, operand 1, single buffered']
    #allocation8 [shape = 's32[1]{0}', space=sflag, size = 0x4, scoped, tag = 'scoped memory for tpu_custom_call.1']
    #allocation9 [shape = 'u8[4096]{0}', space=vmem, size = 0x1000, scoped, tag = 'output window, operand 2, single buffered']
    %11 = vsyncpa [#allocation4], 0
    %12 = vsyncpa [#allocation5], 0
    %13 = vsyncpa [#allocation8], 0
    // Predicated region
    $region2: #{tpu_custom_call.1} parent=1 // pred_check
      _
    $region3: #{tpu_custom_call.1} parent=1 // pred_check_branch
      %15 = sbr.rel (0) target = $region5
    $region4: #{tpu_custom_call.1} parent=1 // pred_region
      %s17 = ssub.s32 256, 256
      %18 = vsyncadd [#allocation4], %s17
      %s19 = sshll.u32 [#allocation3], 4
      %s20 = int_to_ptr.vmem [resolvable:$true] %s19
      %25 = dma.hbm_to_vmem [thread:$0]  %s0, 256, %s20, [#allocation4], 128, 128, 8
    $region5: #{tpu_custom_call.1} parent=1 // pred_fallthru
      _
    // Predicated region
    $region6: #{tpu_custom_call.1} parent=1 // pred_check
      _
    $region7: #{tpu_custom_call.1} parent=1 // pred_check_branch
      %27 = sbr.rel (0) target = $region9
    $region8: #{tpu_custom_call.1} parent=1 // pred_region
      _
    $region9: #{tpu_custom_call.1} parent=1 // pred_fallthru
      _
    // Predicated region
    $region10: #{tpu_custom_call.1} parent=1 // pred_check
      _
    $region11: #{tpu_custom_call.1} parent=1 // pred_check_branch
      %29 = sbr.rel (0) target = $region13
    $region12: #{tpu_custom_call.1} parent=1 // pred_region
      _
    $region13: #{tpu_custom_call.1} parent=1 // pred_fallthru
      _
    // Predicated region
    $region14: #{tpu_custom_call.1} parent=1 // pred_check
      _
    $region15: #{tpu_custom_call.1} parent=1 // pred_check_branch
      %31 = sbr.rel (0) target = $region17
    $region16: #{tpu_custom_call.1} parent=1 // pred_region
      %32 = dma.done [#allocation4], 256
    $region17: #{tpu_custom_call.1} parent=1 // pred_fallthru
      _
    %p33 = scmp.eq.s32.totalorder 0, 0
    // Predicated region
    $region18: #{tpu_custom_call.1} parent=1 // pred_check
      %p34 = pneg %p33
    $region19: #{tpu_custom_call.1} parent=1 // pred_check_branch
      %36 = sbr.rel (%p34) target = $region21
    $region20: #{tpu_custom_call.1} parent=1 // pred_region
      %vm37 = vcmask 130048
      %38 = vst.msk [vmem:[#allocation2] sm:$0xff] %vm37, 0.0
    $region21: #{tpu_custom_call.1} parent=1 // pred_fallthru
      _
    %v39 = vld [vmem:[#allocation2] sm:$0xff]
    %v40 = vld [vmem:[%s1] sm:$0xff]
    %v41 = vld [vmem:[#allocation3] sm:$0xff]
    %v42 = vld [vmem:[#allocation3 + $0x8] sm:$0xff]
    %vm43 = vcmask 261120
    %v45 = vsel %vm43, %v40, 0
    %v48 = vsel %vm43, %v41, 0
    %v51 = vsel %vm43, %v42, 0
    %53 = vmatprep.subr.mxu0 0.0
    %54 = vmatpush1.xpose.msra.mxu0 %v48
    %55 = vmatprep.subr.mxu0 0.0
    %56 = vmatpush1.xpose.msra.mxu0 %v51
    %57 = vmatprep.subr.mxu0 0.0
    %58 = vmatpush1.xpose.msra.mxu0 0.0
    %59 = vmatprep.subr.mxu0 0.0
    %60 = vmatpush1.xpose.msra.mxu0 0.0
    %61 = vmatprep.subr.mxu0 0.0
    %62 = vmatpush1.xpose.msra.mxu0 0.0
    %63 = vmatprep.subr.mxu0 0.0
    %64 = vmatpush1.xpose.msra.mxu0 0.0
    %65 = vmatprep.subr.mxu0 0.0
    %66 = vmatpush1.xpose.msra.mxu0 0.0
    %67 = vmatprep.subr.mxu0 0.0
    %68 = vmatpush1.xpose.msra.mxu0 0.0
    %69 = vmatprep.subr.mxu0 0.0
    %70 = vmatpush1.xpose.msra.mxu0 0.0
    %71 = vmatprep.subr.mxu0 0.0
    %72 = vmatpush1.xpose.msra.mxu0 0.0
    %73 = vmatprep.subr.mxu0 0.0
    %74 = vmatpush1.xpose.msra.mxu0 0.0
    %75 = vmatprep.subr.mxu0 0.0
    %76 = vmatpush1.xpose.msra.mxu0 0.0
    %77 = vmatprep.subr.mxu0 0.0
    %78 = vmatpush1.xpose.msra.mxu0 0.0
    %79 = vmatprep.subr.mxu0 0.0
    %80 = vmatpush1.xpose.msra.mxu0 0.0
    %81 = vmatprep.subr.mxu0 0.0
    %82 = vmatpush1.xpose.msra.mxu0 0.0
    %83 = vmatprep.subr.mxu0 0.0
    %84 = vmatpush1.xpose.msra.mxu0 0.0
    %85 = vmatprep.subr.mxu0 0.0
    %86 = vmatpush1.xpose.msra.mxu0 0.0
    %87 = vmatprep.subr.mxu0 0.0
    %88 = vmatpush1.xpose.msra.mxu0 0.0
    %89 = vmatprep.subr.mxu0 0.0
    %90 = vmatpush1.xpose.msra.mxu0 0.0
    %91 = vmatprep.subr.mxu0 0.0
    %92 = vmatpush1.xpose.msra.mxu0 0.0
    %93 = vmatprep.subr.mxu0 0.0
    %94 = vmatpush1.xpose.msra.mxu0 0.0
    %95 = vmatprep.subr.mxu0 0.0
    %96 = vmatpush1.xpose.msra.mxu0 0.0
    %97 = vmatprep.subr.mxu0 0.0
    %98 = vmatpush1.xpose.msra.mxu0 0.0
    %99 = vmatprep.subr.mxu0 0.0
    %100 = vmatpush1.xpose.msra.mxu0 0.0
    %101 = vmatprep.subr.mxu0 0.0
    %102 = vmatpush1.xpose.msra.mxu0 0.0
    %103 = vmatprep.subr.mxu0 0.0
    %104 = vmatpush1.xpose.msra.mxu0 0.0
    %105 = vmatprep.subr.mxu0 0.0
    %106 = vmatpush1.xpose.msra.mxu0 0.0
    %107 = vmatprep.subr.mxu0 0.0
    %108 = vmatpush1.xpose.msra.mxu0 0.0
    %109 = vmatprep.subr.mxu0 0.0
    %110 = vmatpush1.xpose.msra.mxu0 0.0
    %111 = vmatprep.subr.mxu0 0.0
    %112 = vmatpush1.xpose.msra.mxu0 0.0
    %113 = vmatprep.subr.mxu0 0.0
    %114 = vmatpush1.xpose.msra.mxu0 0.0
    %115 = vmatprep.subr.mxu0 0.0
    %116 = vmatpush1.xpose.msra.mxu0 0.0
    %117 = vmatprep.mubr.f32.mxu0 0.0
    %118 = vmatmul.mubr.f32.gmra.mrb[0].mxu0 %v45
    %v119 = vpop.f32.mrb[0].mxu0
    %v120 = vadd.f32 0.0, %v119
    %v121 = vpop.f32.mrb[0].mxu0
    %122 = vdwg.mxu0
    %v123 = vadd.f32 %v39, %v120
    %vm124 = vcmask 130048
    %125 = vst.msk [vmem:[#allocation2] sm:$0xff] %vm124, %v123
    // Predicated region
    $region22: #{tpu_custom_call.1} parent=1 // pred_check
      %p126 = pneg %p33
    $region23: #{tpu_custom_call.1} parent=1 // pred_check_branch
      %128 = sbr.rel (%p126) target = $region25
    $region24: #{tpu_custom_call.1} parent=1 // pred_region
      %v129 = vld [vmem:[#allocation2] sm:$0xff]
      %v130 = vld [vmem:[%s2] sm:$0xff]
      %132 = vset.pattern.permute.xlu0 0
      %133 = vperm.xlu0 %132, %v130
      %v134 = vpop.permute.xlu0 %133
      %v136 = vadd.f32 %v129, %v134
      %137 = vst.msk [vmem:[#allocation9] sm:$0xff] %vm124, %v136
      %v138 = vlaneseq
      %v139 = vshrl.u32 %v138, 7
      %v140 = vsel %vm124, %v136, -inf
      %v141 = vrot.slane %v140, 4
      %v142 = vmax.f32 %v140, %v141
      %v143 = vrot.slane %v142, 2
      %v144 = vmax.f32 %v142, %v143
      %v145 = vrot.slane %v144, 1
      %v146 = vmax.f32 %v144, %v145
      %vm147 = vcmp.eq.f32.partialorder %v136, %v146
      %v148 = vsel %vm147, %v139, 8
      %v149 = vsel %vm124, %v148, 2147483647
      %v150 = vrot.slane %v149, 4
      %vm151 = vcmp.lt.s32.totalorder %v149, %v150
      %v152 = vsel %vm151, %v149, %v150
      %v153 = vrot.slane %v152, 2
      %vm154 = vcmp.lt.s32.totalorder %v152, %v153
      %v155 = vsel %vm154, %v152, %v153
      %v156 = vrot.slane %v155, 1
      %vm157 = vcmp.lt.s32.totalorder %v155, %v156
      %v158 = vsel %vm157, %v155, %v156
      %vm159 = vcmp.eq.s32.totalorder %v139, %v158
      %v160 = vsel %vm159, %v136, -inf
      %v161 = vsel %vm159, -inf, %v136
      %vm162 = vcmask 122880
      %163 = vst.msk [vmem:[#allocation7] sm:$0x1] %vm162, %v158
      %v164 = vsel %vm124, %v161, -inf
      %v165 = vrot.slane %v164, 4
      %v166 = vmax.f32 %v164, %v165
      %v167 = vrot.slane %v166, 2
      %v168 = vmax.f32 %v166, %v167
      %v169 = vrot.slane %v168, 1
      %v170 = vmax.f32 %v168, %v169
      %vm171 = vcmp.eq.f32.partialorder %v161, %v170
      %v172 = vsel %vm171, %v139, 8
      %v173 = vsel %vm124, %v172, 2147483647
      %v174 = vrot.slane %v173, 4
      %vm175 = vcmp.lt.s32.totalorder %v173, %v174
      %v176 = vsel %vm175, %v173, %v174
      %v177 = vrot.slane %v176, 2
      %vm178 = vcmp.lt.s32.totalorder %v176, %v177
      %v179 = vsel %vm178, %v176, %v177
      %v180 = vrot.slane %v179, 1
      %vm181 = vcmp.lt.s32.totalorder %v179, %v180
      %v182 = vsel %vm181, %v179, %v180
      %vm183 = vcmp.eq.s32.totalorder %v139, %v182
      %v184 = vsel %vm183, %v136, %v160
      %185 = vst.msk [vmem:[#allocation7 + $0x1] sm:$0x1] %vm162, %v182
      %v186 = vsel %vm124, %v184, -inf
      %v187 = vrot.slane %v186, 4
      %v188 = vmax.f32 %v186, %v187
      %v189 = vrot.slane %v188, 2
      %v190 = vmax.f32 %v188, %v189
      %v191 = vrot.slane %v190, 1
      %v192 = vmax.f32 %v190, %v191
      %v193 = vsub.f32 %v184, %v192
      %v194 = vmul.f32 %v193, 1.442695
      %v195 = vpow.pop %v194
      %v196 = vsel %vm124, %v195, 0.0
      %v197 = vrot.slane %v196, 4
      %v198 = vadd.f32 %v196, %v197
      %v199 = vrot.slane %v198, 2
      %v200 = vadd.f32 %v198, %v199
      %v201 = vrot.slane %v200, 1
      %v202 = vadd.f32 %v200, %v201
      %v203 = vrcp.pop %v202
      %v204 = vmul.f32 1.0, %v203
      %v205 = vmul.f32 %v195, %v204
      %206 = vst.msk [vmem:[#allocation6] sm:$0xff] %vm124, %v205
    $region25: #{tpu_custom_call.1} parent=1 // pred_fallthru
      _
    // Predicated region
    $region26: #{tpu_custom_call.1} parent=1 // pred_check
      _
    $region27: #{tpu_custom_call.1} parent=1 // pred_check_branch
      %208 = sbr.rel (0) target = $region29
    $region28: #{tpu_custom_call.1} parent=1 // pred_region
      %s210 = ssub.s32 128, 128
      %211 = vsyncadd [#allocation5], %s210
      %s213 = sshll.u32 [#allocation6], 4
      %s214 = int_to_ptr.vmem [resolvable:$true] %s213
      %216 = dma.vmem_to_hbm [thread:$0]  %s214, 128, %s3, [#allocation5]
    $region29: #{tpu_custom_call.1} parent=1 // pred_fallthru
      _
    // Predicated region
    $region30: #{tpu_custom_call.1} parent=1 // pred_check
      _
    $region31: #{tpu_custom_call.1} parent=1 // pred_check_branch
      %218 = sbr.rel (0) target = $region33
    $region32: #{tpu_custom_call.1} parent=1 // pred_region
      %s220 = ssub.s32 32, 32
      %221 = vsyncadd [#allocation8], %s220
      %s223 = sshll.u32 [#allocation7], 4
      %s224 = int_to_ptr.vmem [resolvable:$true] %s223
      %226 = dma.vmem_to_hbm [thread:$0]  %s224, 32, %s4, [#allocation8]
    $region33: #{tpu_custom_call.1} parent=1 // pred_fallthru
      _
    // Predicated region
    $region34: #{tpu_custom_call.1} parent=1 // pred_check
      _
    $region35: #{tpu_custom_call.1} parent=1 // pred_check_branch
      %228 = sbr.rel (0) target = $region37
    $region36: #{tpu_custom_call.1} parent=1 // pred_region
      %s230 = ssub.s32 128, 128
      %231 = vsyncadd [#allocation8], %s230
      %s233 = sshll.u32 [#allocation9], 4
      %s234 = int_to_ptr.vmem [resolvable:$true] %s233
      %236 = dma.vmem_to_hbm [thread:$0]  %s234, 128, %s5, [#allocation8]
    $region37: #{tpu_custom_call.1} parent=1 // pred_fallthru
      _
    // Predicated region
    $region38: #{tpu_custom_call.1} parent=1 // pred_check
      _
    $region39: #{tpu_custom_call.1} parent=1 // pred_check_branch
      %238 = sbr.rel (0) target = $region41
    $region40: #{tpu_custom_call.1} parent=1 // pred_region
      %239 = dma.done [#allocation5], 128
    $region41: #{tpu_custom_call.1} parent=1 // pred_fallthru
      _
    // Predicated region
    $region42: #{tpu_custom_call.1} parent=1 // pred_check
      _
    $region43: #{tpu_custom_call.1} parent=1 // pred_check_branch
      %241 = sbr.rel (0) target = $region45
    $region44: #{tpu_custom_call.1} parent=1 // pred_region
      %242 = dma.done [#allocation8], 32
    $region45: #{tpu_custom_call.1} parent=1 // pred_fallthru
      _
    // Predicated region
    $region46: #{tpu_custom_call.1} parent=1 // pred_check
      _
    $region47: #{tpu_custom_call.1} parent=1 // pred_check_branch
      %244 = sbr.rel (0) target = $region49
    $region48: #{tpu_custom_call.1} parent=1 // pred_region
      %245 = dma.done [#allocation8], 128
    $region49: #{tpu_custom_call.1} parent=1 // pred_fallthru
      _
    %246 = vsyncpa [#allocation4], 1
    %247 = vsyncpa [#allocation5], 1
    %248 = vsyncpa [#allocation8], 1

// kernel: tpu_custom_call.1
$region0: #{tpu_custom_call.1}
  #allocation0 [shape = 'u32[]', space=smem, size = 0x4, offset = 0x4, fixed_abs, tag = 'smem constant byte address 0x4 - core index']
  #allocation1 [shape = 'u32[144,128]{1,0:T(1,128)}', space=vmem, size = 0x12000, scoped, tag = 'internal scratch']
  #allocation2 [shape = 'f32[8,16]{1,0:T(8,128)}', space=vmem, size = 0x1000, scoped, tag = 'scratch operand']
  %s0 = inlined_call_operand.hbm [shape: f32[16,32], index: 0, kind: input, shape index: {}]
  %s1 = inlined_call_operand.vmem [shape: f32[8,32], index: 1, kind: input, shape index: {}]
  %s2 = inlined_call_operand.vmem [shape: f32[8,1], index: 2, kind: input, shape index: {}]
  %s3 = inlined_call_operand.hbm [shape: f32[8,16], index: 3, kind: output, shape index: {0}]
  %s4 = inlined_call_operand.hbm [shape: s32[2,16], index: 4, kind: output, shape index: {1}]
  %s5 = inlined_call_operand.hbm [shape: f32[8,16], index: 5, kind: output, shape index: {2}]
  %6 = xla_tuple %s3, %s4, %s5
  %s7 = sld [smem:[#allocation0]]
  $region50: #{tpu_custom_call.1} parent=0
    _
  %s9 = ssub.s32 1, %s7
  %s10 = scalar_select 0, %s9, %s7
  $region1: #{tpu_custom_call.1} parent=0
    #allocation3 [shape = 'u8[8192]{0}', space=vmem, size = 0x2000, scoped, tag = 'input window, operand 0, single buffered']
    #allocation4 [shape = 's32[1]{0}', space=sflag, size = 0x4, scoped, tag = 'scoped memory for tpu_custom_call.1']
    #allocation5 [shape = 's32[1]{0}', space=sflag, size = 0x4, scoped, tag = 'scoped memory for tpu_custom_call.1']
    #allocation6 [shape = 'u8[4096]{0}', space=vmem, size = 0x1000, scoped, tag = 'output window, operand 0, single buffered']
    #allocation7 [shape = 'u8[1024]{0}', space=vmem, size = 0x400, scoped, tag = 'output window, operand 1, single buffered']
    #allocation8 [shape = 's32[1]{0}', space=sflag, size = 0x4, scoped, tag = 'scoped memory for tpu_custom_call.1']
    #allocation9 [shape = 'u8[4096]{0}', space=vmem, size = 0x1000, scoped, tag = 'output window, operand 2, single buffered']
    %11 = vsyncpa [#allocation4], 0
    %12 = vsyncpa [#allocation5], 0
    %13 = vsyncpa [#allocation8], 0
    // Predicated region
    $region2: #{tpu_custom_call.1} parent=1 // pred_check
      _
    $region3: #{tpu_custom_call.1} parent=1 // pred_check_branch
      %15 = sbr.rel (0) target = $region5
    $region4: #{tpu_custom_call.1} parent=1 // pred_region
      %s17 = ssub.s32 256, 256
      %18 = vsyncadd [#allocation4], %s17
      %s19 = sshll.u32 [#allocation3], 4
      %s20 = int_to_ptr.vmem [resolvable:$true] %s19
      %25 = dma.hbm_to_vmem [thread:$0]  %s0, 256, %s20, [#allocation4], 128, 128, 8
    $region5: #{tpu_custom_call.1} parent=1 // pred_fallthru
      _
    // Predicated region
    $region6: #{tpu_custom_call.1} parent=1 // pred_check
      _
    $region7: #{tpu_custom_call.1} parent=1 // pred_check_branch
      %27 = sbr.rel (0) target = $region9
    $region8: #{tpu_custom_call.1} parent=1 // pred_region
      _
    $region9: #{tpu_custom_call.1} parent=1 // pred_fallthru
      _
    // Predicated region
    $region10: #{tpu_custom_call.1} parent=1 // pred_check
      _
    $region11: #{tpu_custom_call.1} parent=1 // pred_check_branch
      %29 = sbr.rel (0) target = $region13
    $region12: #{tpu_custom_call.1} parent=1 // pred_region
      _
    $region13: #{tpu_custom_call.1} parent=1 // pred_fallthru
      _
    // Predicated region
    $region14: #{tpu_custom_call.1} parent=1 // pred_check
      _
    $region15: #{tpu_custom_call.1} parent=1 // pred_check_branch
      %31 = sbr.rel (0) target = $region17
    $region16: #{tpu_custom_call.1} parent=1 // pred_region
      %32 = dma.done [#allocation4], 256
    $region17: #{tpu_custom_call.1} parent=1 // pred_fallthru
      _
    %p33 = scmp.eq.s32.totalorder 0, 0
    // Predicated region
    $region18: #{tpu_custom_call.1} parent=1 // pred_check
      %p34 = pneg %p33
    $region19: #{tpu_custom_call.1} parent=1 // pred_check_branch
      %36 = sbr.rel (%p34) target = $region21
    $region20: #{tpu_custom_call.1} parent=1 // pred_region
      %vm37 = vcmask 130048
      %38 = vst.msk [vmem:[#allocation2] sm:$0xff] %vm37, 0.0
    $region21: #{tpu_custom_call.1} parent=1 // pred_fallthru
      _
    %v39 = vld [vmem:[#allocation2] sm:$0xff]
    %v40 = vld [vmem:[%s1] sm:$0xff]
    %v41 = vld [vmem:[#allocation3] sm:$0xff]
    %v42 = vld [vmem:[#allocation3 + $0x8] sm:$0xff]
    %vm43 = vcmask 261120
    %v45 = vsel %vm43, %v40, 0
    %v48 = vsel %vm43, %v41, 0
    %v51 = vsel %vm43, %v42, 0
    %53 = vmatprep.subr.mxu0 0.0
    %54 = vmatpush1.xpose.msra.mxu0 %v48
    %55 = vmatprep.subr.mxu0 0.0
    %56 = vmatpush1.xpose.msra.mxu0 %v51
    %57 = vmatprep.subr.mxu0 0.0
    %58 = vmatpush1.xpose.msra.mxu0 0.0
    %59 = vmatprep.subr.mxu0 0.0
    %60 = vmatpush1.xpose.msra.mxu0 0.0
    %61 = vmatprep.subr.mxu0 0.0
    %62 = vmatpush1.xpose.msra.mxu0 0.0
    %63 = vmatprep.subr.mxu0 0.0
    %64 = vmatpush1.xpose.msra.mxu0 0.0
    %65 = vmatprep.subr.mxu0 0.0
    %66 = vmatpush1.xpose.msra.mxu0 0.0
    %67 = vmatprep.subr.mxu0 0.0
    %68 = vmatpush1.xpose.msra.mxu0 0.0
    %69 = vmatprep.subr.mxu0 0.0
    %70 = vmatpush1.xpose.msra.mxu0 0.0
    %71 = vmatprep.subr.mxu0 0.0
    %72 = vmatpush1.xpose.msra.mxu0 0.0
    %73 = vmatprep.subr.mxu0 0.0
    %74 = vmatpush1.xpose.msra.mxu0 0.0
    %75 = vmatprep.subr.mxu0 0.0
    %76 = vmatpush1.xpose.msra.mxu0 0.0
    %77 = vmatprep.subr.mxu0 0.0
    %78 = vmatpush1.xpose.msra.mxu0 0.0
    %79 = vmatprep.subr.mxu0 0.0
    %80 = vmatpush1.xpose.msra.mxu0 0.0
    %81 = vmatprep.subr.mxu0 0.0
    %82 = vmatpush1.xpose.msra.mxu0 0.0
    %83 = vmatprep.subr.mxu0 0.0
    %84 = vmatpush1.xpose.msra.mxu0 0.0
    %85 = vmatprep.subr.mxu0 0.0
    %86 = vmatpush1.xpose.msra.mxu0 0.0
    %87 = vmatprep.subr.mxu0 0.0
    %88 = vmatpush1.xpose.msra.mxu0 0.0
    %89 = vmatprep.subr.mxu0 0.0
    %90 = vmatpush1.xpose.msra.mxu0 0.0
    %91 = vmatprep.subr.mxu0 0.0
    %92 = vmatpush1.xpose.msra.mxu0 0.0
    %93 = vmatprep.subr.mxu0 0.0
    %94 = vmatpush1.xpose.msra.mxu0 0.0
    %95 = vmatprep.subr.mxu0 0.0
    %96 = vmatpush1.xpose.msra.mxu0 0.0
    %97 = vmatprep.subr.mxu0 0.0
    %98 = vmatpush1.xpose.msra.mxu0 0.0
    %99 = vmatprep.subr.mxu0 0.0
    %100 = vmatpush1.xpose.msra.mxu0 0.0
    %101 = vmatprep.subr.mxu0 0.0
    %102 = vmatpush1.xpose.msra.mxu0 0.0
    %103 = vmatprep.subr.mxu0 0.0
    %104 = vmatpush1.xpose.msra.mxu0 0.0
    %105 = vmatprep.subr.mxu0 0.0
    %106 = vmatpush1.xpose.msra.mxu0 0.0
    %107 = vmatprep.subr.mxu0 0.0
    %108 = vmatpush1.xpose.msra.mxu0 0.0
    %109 = vmatprep.subr.mxu0 0.0
    %110 = vmatpush1.xpose.msra.mxu0 0.0
    %111 = vmatprep.subr.mxu0 0.0
    %112 = vmatpush1.xpose.msra.mxu0 0.0
    %113 = vmatprep.subr.mxu0 0.0
    %114 = vmatpush1.xpose.msra.mxu0 0.0
    %115 = vmatprep.subr.mxu0 0.0
    %116 = vmatpush1.xpose.msra.mxu0 0.0
    %117 = vmatprep.mubr.f32.mxu0 0.0
    %118 = vmatmul.mubr.f32.gmra.mrb[0].mxu0 %v45
    %v119 = vpop.f32.mrb[0].mxu0
    %v120 = vadd.f32 0.0, %v119
    %v121 = vpop.f32.mrb[0].mxu0
    %122 = vdwg.mxu0
    %v123 = vadd.f32 %v39, %v120
    %vm124 = vcmask 130048
    %125 = vst.msk [vmem:[#allocation2] sm:$0xff] %vm124, %v123
    // Predicated region
    $region22: #{tpu_custom_call.1} parent=1 // pred_check
      %p126 = pneg %p33
    $region23: #{tpu_custom_call.1} parent=1 // pred_check_branch
      %128 = sbr.rel (%p126) target = $region25
    $region24: #{tpu_custom_call.1} parent=1 // pred_region
      %v129 = vld [vmem:[#allocation2] sm:$0xff]
      %v130 = vld [vmem:[%s2] sm:$0xff]
      %132 = vset.pattern.permute.xlu0 0
      %133 = vperm.xlu0 %132, %v130
      %v134 = vpop.permute.xlu0 %133
      %v136 = vadd.f32 %v129, %v134
      %137 = vst.msk [vmem:[#allocation9] sm:$0xff] %vm124, %v136
      %v138 = vlaneseq
      %v139 = vshrl.u32 %v138, 7
      %v140 = vsel %vm124, %v136, -inf
      %v141 = vrot.slane %v140, 4
      %v142 = vmax.f32 %v140, %v141
      %v143 = vrot.slane %v142, 2
      %v144 = vmax.f32 %v142, %v143
      %v145 = vrot.slane %v144, 1
      %v146 = vmax.f32 %v144, %v145
      %vm147 = vcmp.eq.f32.partialorder %v136, %v146
      %v148 = vsel %vm147, %v139, 8
      %v149 = vsel %vm124, %v148, 2147483647
      %v150 = vrot.slane %v149, 4
      %vm151 = vcmp.lt.s32.totalorder %v149, %v150
      %v152 = vsel %vm151, %v149, %v150
      %v153 = vrot.slane %v152, 2
      %vm154 = vcmp.lt.s32.totalorder %v152, %v153
      %v155 = vsel %vm154, %v152, %v153
      %v156 = vrot.slane %v155, 1
      %vm157 = vcmp.lt.s32.totalorder %v155, %v156
      %v158 = vsel %vm157, %v155, %v156
      %vm159 = vcmp.eq.s32.totalorder %v139, %v158
      %v160 = vsel %vm159, %v136, -inf
      %v161 = vsel %vm159, -inf, %v136
      %vm162 = vcmask 122880
      %163 = vst.msk [vmem:[#allocation7] sm:$0x1] %vm162, %v158
      %v164 = vsel %vm124, %v161, -inf
      %v165 = vrot.slane %v164, 4
      %v166 = vmax.f32 %v164, %v165
      %v167 = vrot.slane %v166, 2
      %v168 = vmax.f32 %v166, %v167
      %v169 = vrot.slane %v168, 1
      %v170 = vmax.f32 %v168, %v169
      %vm171 = vcmp.eq.f32.partialorder %v161, %v170
      %v172 = vsel %vm171, %v139, 8
      %v173 = vsel %vm124, %v172, 2147483647
      %v174 = vrot.slane %v173, 4
      %vm175 = vcmp.lt.s32.totalorder %v173, %v174
      %v176 = vsel %vm175, %v173, %v174
      %v177 = vrot.slane %v176, 2
      %vm178 = vcmp.lt.s32.totalorder %v176, %v177
      %v179 = vsel %vm178, %v176, %v177
      %v180 = vrot.slane %v179, 1
      %vm181 = vcmp.lt.s32.totalorder %v179, %v180
      %v182 = vsel %vm181, %v179, %v180
      %vm183 = vcmp.eq.s32.totalorder %v139, %v182
      %v184 = vsel %vm183, %v136, %v160
      %185 = vst.msk [vmem:[#allocation7 + $0x1] sm:$0x1] %vm162, %v182
      %v186 = vsel %vm124, %v184, -inf
      %v187 = vrot.slane %v186, 4
      %v188 = vmax.f32 %v186, %v187
      %v189 = vrot.slane %v188, 2
      %v190 = vmax.f32 %v188, %v189
      %v191 = vrot.slane %v190, 1
      %v192 = vmax.f32 %v190, %v191
      %v193 = vsub.f32 %v184, %v192
      %v194 = vmul.f32 %v193, 1.442695
      %v195 = vpow.pop %v194
      %v196 = vsel %vm124, %v195, 0.0
      %v197 = vrot.slane %v196, 4
      %v198 = vadd.f32 %v196, %v197
      %v199 = vrot.slane %v198, 2
      %v200 = vadd.f32 %v198, %v199
      %v201 = vrot.slane %v200, 1
      %v202 = vadd.f32 %v200, %v201
      %v203 = vrcp.pop %v202
      %v204 = vmul.f32 1.0, %v203
      %v205 = vmul.f32 %v195, %v204
      %206 = vst.msk [vmem:[#allocation6] sm:$0xff] %vm124, %v205
    $region25: #{tpu_custom_call.1} parent=1 // pred_fallthru
      _
    // Predicated region
    $region26: #{tpu_custom_call.1} parent=1 // pred_check
      _
    $region27: #{tpu_custom_call.1} parent=1 // pred_check_branch
      %208 = sbr.rel (0) target = $region29
    $region28: #{tpu_custom_call.1} parent=1 // pred_region
      %s210 = ssub.s32 128, 128
      %211 = vsyncadd [#allocation5], %s210
      %s213 = sshll.u32 [#allocation6], 4
      %s214 = int_to_ptr.vmem [resolvable:$true] %s213
      %216 = dma.vmem_to_hbm [thread:$0]  %s214, 128, %s3, [#allocation5]
    $region29: #{tpu_custom_call.1} parent=1 // pred_fallthru
      _
    // Predicated region
    $region30: #{tpu_custom_call.1} parent=1 // pred_check
      _
    $region31: #{tpu_custom_call.1} parent=1 // pred_check_branch
      %218 = sbr.rel (0) target = $region33
    $region32: #{tpu_custom_call.1} parent=1 // pred_region
      %s220 = ssub.s32 32, 32
      %221 = vsyncadd [#allocation8], %s220
      %s223 = sshll.u32 [#allocation7], 4
      %s224 = int_to_ptr.vmem [resolvable:$true] %s223
      %226 = dma.vmem_to_hbm [thread:$0]  %s224, 32, %s4, [#allocation8]
    $region33: #{tpu_custom_call.1} parent=1 // pred_fallthru
      _
    // Predicated region
    $region34: #{tpu_custom_call.1} parent=1 // pred_check
      _
    $region35: #{tpu_custom_call.1} parent=1 // pred_check_branch
      %228 = sbr.rel (0) target = $region37
    $region36: #{tpu_custom_call.1} parent=1 // pred_region
      %s230 = ssub.s32 128, 128
      %231 = vsyncadd [#allocation8], %s230
      %s233 = sshll.u32 [#allocation9], 4
      %s234 = int_to_ptr.vmem [resolvable:$true] %s233
      %236 = dma.vmem_to_hbm [thread:$0]  %s234, 128, %s5, [#allocation8]
    $region37: #{tpu_custom_call.1} parent=1 // pred_fallthru
      _
    // Predicated region
    $region38: #{tpu_custom_call.1} parent=1 // pred_check
      _
    $region39: #{tpu_custom_call.1} parent=1 // pred_check_branch
      %238 = sbr.rel (0) target = $region41
    $region40: #{tpu_custom_call.1} parent=1 // pred_region
      %239 = dma.done [#allocation5], 128
    $region41: #{tpu_custom_call.1} parent=1 // pred_fallthru
      _
    // Predicated region
    $region42: #{tpu_custom_call.1} parent=1 // pred_check
      _
    $region43: #{tpu_custom_call.1} parent=1 // pred_check_branch
      %241 = sbr.rel (0) target = $region45
    $region44: #{tpu_custom_call.1} parent=1 // pred_region
      %242 = dma.done [#allocation8], 32
    $region45: #{tpu_custom_call.1} parent=1 // pred_fallthru
      _
    // Predicated region
    $region46: #{tpu_custom_call.1} parent=1 // pred_check
      _
    $region47: #{tpu_custom_call.1} parent=1 // pred_check_branch
      %244 = sbr.rel (0) target = $region49
    $region48: #{tpu_custom_call.1} parent=1 // pred_region
      %245 = dma.done [#allocation8], 128
    $region49: #{tpu_custom_call.1} parent=1 // pred_fallthru
      _
    %246 = vsyncpa [#allocation4], 1
    %247 = vsyncpa [#allocation5], 1
    %248 = vsyncpa [#allocation8], 1

</llo_original>
